<compile_context>
chip_gen: v5e
topology: v5e:2x2
jax: 0.10.0
libtpu: 0.0.40
codegen_flags: <defaults>
</compile_context>

<pallas_src>
import jax
import jax.numpy as jnp
from jax.experimental import pallas as pl
from jax.experimental.pallas import tpu as pltpu


_BLOCK_BYTES = 4 * 1024 * 1024   # per-block HBM->VMEM footprint cap
_LANE = 128                      # TPU lane width


def _partial_sum_kernel(x_ref, o_ref):
    """Accumulate per-lane partial sums of one (tm, lane) block into o_ref."""
    # o_ref's block index depends only on the parallel axis, so it stays
    # resident across the inner "arbitrary" axis and acts as the accumulator.
    @pl.when(pl.program_id(1) == 0)
    def _():
        o_ref[...] = jnp.zeros_like(o_ref)

    rt, lane = o_ref.shape
    # Cast per block inside the kernel (no wrapper-side upcast of the input).
    x = x_ref[...].astype(o_ref.dtype)
    # (tm, lane) -> (tm // rt, rt, lane) is a leading-axis split (layout free);
    # the axis-0 sum is pure VPU vreg adds.  The expensive cross-lane reduce of
    # the remaining (rt, lane) partials happens once, in the wrapper.
    o_ref[...] += jnp.sum(x.reshape(-1, rt, lane), axis=0)


def _choose_tm(rows, num_partials, cap):
    """Largest t (multiple of 8, <= cap) with rows % (num_partials * t) == 0."""
    t = cap
    floor = max(8, cap // 8)     # don't trade an exact fit for tiny blocks
    while t >= floor:
        if rows % (num_partials * t) == 0:
            return t
        t -= 8
    return None


def simple_sum(x: jax.Array) -> jax.Array:
    """Sum of all elements of x (equivalent to torch.sum(x))."""
    if x.ndim == 0:
        return x
    if x.size == 0:
        return jnp.zeros((), x.dtype)

    if x.dtype == jnp.bool_:
        # TODO(synk): torch.sum(bool) returns int64; JAX TPU defaults to 32-bit.
        x = x.astype(jnp.int32)

    if jnp.issubdtype(x.dtype, jnp.floating):
        acc_dtype = jnp.float32
        out_dtype = x.dtype
    elif jnp.issubdtype(x.dtype, jnp.integer):
        # TODO(synk): torch.sum promotes ints to int64; we accumulate in int32
        # (x64 is disabled by default in JAX on TPU).
        acc_dtype = jnp.int32
        out_dtype = jnp.int32
    else:
        acc_dtype = x.dtype
        out_dtype = x.dtype

    total = x.size
    itemsize = max(1, jnp.dtype(x.dtype).itemsize)

    # ---- free 2-D view (rows, lane) with a lane-dense last dim -------------
    lane = None
    for cand in (512, 256, 128):
        if total % cand == 0:
            lane = cand
            break
    if lane is None:
        lane = x.shape[-1]           # fall back to the natural last dim
    rows = total // lane

    # ---- choose block rows (tm), per-core partials, grid --------------------
    lane_padded = -(-lane // _LANE) * _LANE
    tm_budget = max(8, (_BLOCK_BYTES // (lane_padded * itemsize)) // 8 * 8)

    num_partials = 2 if rows >= 16 else 1   # one partial tile per TensorCore
    padded_rows = rows
    if rows <= 8:
        tm = rows
    else:
        per_core = -(-rows // num_partials)
        cap = max(8, min(tm_budget, (per_core // 8) * 8))
        tm = _choose_tm(rows, num_partials, cap)
        if tm is None:
            # No exact fit with reasonably sized blocks: zero-pad so the grid
            # covers the array exactly (costs one extra copy; only hit for
            # awkward element counts).
            tm = cap
            padded_rows = -(-rows // (num_partials * tm)) * (num_partials * tm)
    steps = padded_rows // (num_partials * tm)
    row_tile = 8 if tm % 8 == 0 else tm      # height of the per-core partial

    if padded_rows == rows:
        x2d = x.reshape(rows, lane)          # free view, no copy
    else:
        flat = jnp.pad(x.reshape(-1), (0, (padded_rows - rows) * lane))
        x2d = flat.reshape(padded_rows, lane)

    partials = pl.pallas_call(
        _partial_sum_kernel,
        out_shape=jax.ShapeDtypeStruct((num_partials * row_tile, lane), acc_dtype),
        grid_spec=pltpu.PrefetchScalarGridSpec(
            num_scalar_prefetch=0,
            grid=(num_partials, steps),
            in_specs=[
                pl.BlockSpec((tm, lane), lambda c, j: (c * steps + j, 0)),
            ],
            out_specs=pl.BlockSpec((row_tile, lane), lambda c, j: (c, 0)),
        ),
        compiler_params=pltpu.CompilerParams(
            # Outer axis: independent per-core partials (megacore on v7x).
            # Inner axis: sequential reduction into the resident output block.
            dimension_semantics=("parallel", "arbitrary"),
        ),
    )(x2d)

    # Final reduce of the tiny partial tile(s) in plain XLA (<= ~32 KiB).
    return jnp.sum(partials).astype(out_dtype)


if __name__ == "__main__":
    key = jax.random.PRNGKey(0)

    # Primary case: [batch, num_interests, hidden] like `extracted_interests`.
    x = jax.random.normal(key, (2, 8, 32), dtype=jnp.float32)
    result = simple_sum(x)
    jax.block_until_ready(result)
    ref = jnp.sum(x)
    assert result.shape == ()
    assert jnp.allclose(result, ref, rtol=1e-5, atol=1e-5), (result, ref)

    # Exercise the two-partial (per-core) path.
    k1, k2 = jax.random.split(key)
    x2 = jax.random.normal(k1, (4, 16, 128), dtype=jnp.float32)
    r2 = simple_sum(x2)
    jax.block_until_ready(r2)
    assert jnp.allclose(r2, jnp.sum(x2), rtol=1e-4, atol=1e-3), (r2, jnp.sum(x2))

    # Exercise the multi-step accumulation (+ zero-pad fallback) path.
    x3 = jax.random.normal(k2, (3, 3, 512), dtype=jnp.float32)
    r3 = simple_sum(x3)
    jax.block_until_ready(r3)
    assert jnp.allclose(r3, jnp.sum(x3), rtol=1e-4, atol=1e-3), (r3, jnp.sum(x3))

    print("KERNEL_OK")
</pallas_src>

<mosaic_0001>
module attributes {stable_mosaic.version = 11 : i64} {
  func.func @_partial_sum_kernel(%arg0: i32, %arg1: i32, %arg2: memref<1x512xf32, #tpu.memory_space<vmem>>, %arg3: memref<1x512xf32, #tpu.memory_space<vmem>>) attributes {dimension_semantics = [#tpu.dimension_semantics<parallel>, #tpu.dimension_semantics<arbitrary>], iteration_bounds = array<i64: 1, 1>, scalar_prefetch = 0 : i64, scratch_operands = 0 : i64, tpu.core_type = #tpu.core_type<tc>, window_params = [{transform_indices = @transform_0, window_bounds = array<i64: 1, 512>}, {transform_indices = @transform_1, window_bounds = array<i64: 1, 512>}]} {
    %c0_i32 = arith.constant 0 : i32
    %0 = arith.cmpi eq, %arg1, %c0_i32 : i32
    %1 = arith.extui %0 : i1 to i32
    %c0_i32_0 = arith.constant 0 : i32
    %2 = arith.cmpi ne, %1, %c0_i32_0 : i32
    scf.if %2 {
      %cst_6 = arith.constant 0.000000e+00 : f32
      %9 = vector.broadcast %cst_6 : f32 to vector<1x512xf32>
      %c0_7 = arith.constant 0 : index
      %c0_8 = arith.constant 0 : index
      %10 = vector.load %arg3[%c0_7, %c0_8] : memref<1x512xf32, #tpu.memory_space<vmem>>, vector<1x512xf32>
      tpu.vector_store %arg3[%c0_7, %c0_8], %9 {strides = array<i32>} : memref<1x512xf32, #tpu.memory_space<vmem>>, vector<1x512xf32>,
    } else {
    }
    %c0 = arith.constant 0 : index
    %c0_1 = arith.constant 0 : index
    %3 = vector.load %arg2[%c0, %c0_1] : memref<1x512xf32, #tpu.memory_space<vmem>>, vector<1x512xf32>
    %c0_2 = arith.constant 0 : index
    %c0_3 = arith.constant 0 : index
    %4 = vector.load %arg3[%c0_2, %c0_3] : memref<1x512xf32, #tpu.memory_space<vmem>>, vector<1x512xf32>
    %5 = vector.shape_cast %3 : vector<1x512xf32> to vector<1x1x512xf32>
    %cst = arith.constant dense<0.000000e+00> : vector<1x512xf32>
    %6 = vector.multi_reduction <add>, %5, %cst [0] : vector<1x1x512xf32> to vector<1x512xf32>
    %7 = arith.addf %4, %6 : vector<1x512xf32>
    %c0_4 = arith.constant 0 : index
    %c0_5 = arith.constant 0 : index
    %8 = vector.load %arg3[%c0_4, %c0_5] : memref<1x512xf32, #tpu.memory_space<vmem>>, vector<1x512xf32>
    tpu.vector_store %arg3[%c0_4, %c0_5], %7 {strides = array<i32>} : memref<1x512xf32, #tpu.memory_space<vmem>>, vector<1x512xf32>,
    return
  }
  func.func @transform_0(%arg0: i32, %arg1: i32) -> (i32, i32) {
    %c1_i32 = arith.constant 1 : i32
    %0 = arith.muli %arg0, %c1_i32 : i32
    %1 = arith.addi %0, %arg1 : i32
    %c0_i32 = arith.constant 0 : i32
    %c0_i32_0 = arith.constant 0 : i32
    return %1, %c0_i32 : i32, i32
  }
  func.func @transform_1(%arg0: i32, %arg1: i32) -> (i32, i32) {
    %c0_i32 = arith.constant 0 : i32
    %c0_i32_0 = arith.constant 0 : i32
    return %arg0, %c0_i32 : i32, i32
  }
}

</mosaic_0001>

<llo_original>
// kernel: tpu_custom_call.1
$region0: #{tpu_custom_call.1}
  #allocation0 [shape = 'u32[]', space=smem, size = 0x4, offset = 0x4, fixed_abs, tag = 'smem constant byte address 0x4 - core index']
  #allocation1 [shape = 'u32[72,128]{1,0:T(1,128)}', space=vmem, size = 0x9000, scoped, tag = 'internal scratch']
  %s0 = inlined_call_operand.hbm [shape: f32[1,512], index: 0, kind: input, shape index: {}]
  %s1 = inlined_call_operand.hbm [shape: f32[1,512], index: 1, kind: output, shape index: {}]
  %s2 = sld [smem:[#allocation0]]
  $region22: #{tpu_custom_call.1} parent=0
    _
  %s4 = ssub.s32 1, %s2
  %s5 = scalar_select 0, %s4, %s2
  $region1: #{tpu_custom_call.1} parent=0
    #allocation2 [shape = 'u8[2048]{0}', space=vmem, size = 0x800, scoped, tag = 'input window, operand 0, single buffered']
    #allocation3 [shape = 's32[1]{0}', space=sflag, size = 0x4, scoped, tag = 'scoped memory for tpu_custom_call.1']
    #allocation4 [shape = 's32[1]{0}', space=sflag, size = 0x4, scoped, tag = 'scoped memory for tpu_custom_call.1']
    #allocation5 [shape = 'u8[2048]{0}', space=vmem, size = 0x800, scoped, tag = 'output window, operand 0, single buffered']
    %6 = vsyncpa [#allocation3], 0
    %7 = vsyncpa [#allocation4], 0
    // Predicated region
    $region2: #{tpu_custom_call.1} parent=1 // pred_check
      _
    $region3: #{tpu_custom_call.1} parent=1 // pred_check_branch
      %9 = sbr.rel (0) target = $region5
    $region4: #{tpu_custom_call.1} parent=1 // pred_region
      %s10 = sadd.s32 0, 0
      %12 = vsyncadd [#allocation3], 0
      %s13 = smul.addr %s10, 4
      %s14 = scalar_lea.hbm %s0, %s13
      %s16 = sshll.u32 %s14, 4
      %s17 = int_to_ptr.hbm [resolvable:$true] %s16
      %s18 = sshll.u32 [#allocation2], 4
      %s19 = int_to_ptr.vmem [resolvable:$true] %s18
      %21 = dma.hbm_to_vmem [thread:$0]  %s17, 64, %s19, [#allocation3]
    $region5: #{tpu_custom_call.1} parent=1 // pred_fallthru
      _
    // Predicated region
    $region6: #{tpu_custom_call.1} parent=1 // pred_check
      _
    $region7: #{tpu_custom_call.1} parent=1 // pred_check_branch
      %23 = sbr.rel (0) target = $region9
    $region8: #{tpu_custom_call.1} parent=1 // pred_region
      %25 = dma.done [#allocation3], 64
    $region9: #{tpu_custom_call.1} parent=1 // pred_fallthru
      _
    %s26 = sadd.s32 0, 0
    %p27 = scmp.eq.s32.totalorder 0, 0
    // Predicated region
    $region10: #{tpu_custom_call.1} parent=1 // pred_check
      %p28 = pneg %p27
    $region11: #{tpu_custom_call.1} parent=1 // pred_check_branch
      %30 = sbr.rel (%p28) target = $region13
    $region12: #{tpu_custom_call.1} parent=1 // pred_region
      %v31 = vlaneseq
      %vm32 = vcmp.ge.s32.totalorder %v31, 0
      %vm33 = vcmp.lt.s32.totalorder %v31, 512
      %vm34 = vmand %vm32, %vm33
      %35 = vst.msk [vmem:[#allocation5] sm:$0xf] %vm34, 0.0
    $region13: #{tpu_custom_call.1} parent=1 // pred_fallthru
      _
    %v36 = vld [vmem:[#allocation2] sm:$0xf]
    %v37 = vld [vmem:[#allocation5] sm:$0xf]
    %v38 = vadd.f32 %v36, 0.0
    %v39 = vadd.f32 %v37, %v38
    %v40 = vlaneseq
    %vm41 = vcmp.ge.s32.totalorder %v40, 0
    %vm42 = vcmp.lt.s32.totalorder %v40, 512
    %vm43 = vmand %vm41, %vm42
    %44 = vst.msk [vmem:[#allocation5] sm:$0xf] %vm43, %v39
    // Predicated region
    $region14: #{tpu_custom_call.1} parent=1 // pred_check
      _
    $region15: #{tpu_custom_call.1} parent=1 // pred_check_branch
      %46 = sbr.rel (0) target = $region17
    $region16: #{tpu_custom_call.1} parent=1 // pred_region
      %48 = vsyncadd [#allocation4], 0
      %s50 = sshll.u32 [#allocation5], 4
      %s51 = int_to_ptr.vmem [resolvable:$true] %s50
      %s52 = sshll.u32 %s1, 4
      %s53 = int_to_ptr.hbm [resolvable:$true] %s52
      %55 = dma.vmem_to_hbm [thread:$0]  %s51, 64, %s53, [#allocation4]
    $region17: #{tpu_custom_call.1} parent=1 // pred_fallthru
      _
    // Predicated region
    $region18: #{tpu_custom_call.1} parent=1 // pred_check
      _
    $region19: #{tpu_custom_call.1} parent=1 // pred_check_branch
      %57 = sbr.rel (0) target = $region21
    $region20: #{tpu_custom_call.1} parent=1 // pred_region
      %59 = dma.done [#allocation4], 64
    $region21: #{tpu_custom_call.1} parent=1 // pred_fallthru
      _
    %60 = vsyncpa [#allocation3], 1
    %61 = vsyncpa [#allocation4], 1

</llo_original>
